<compile_context>
chip_gen: v7x
topology: tpu7x:2x2x1
jax: 0.10.0
libtpu: 0.0.40
codegen_flags: <defaults>
</compile_context>

<pallas_src>
import jax
import jax.numpy as jnp
from jax.experimental import pallas as pl
from jax.experimental.pallas import tpu as pltpu


def rnn_recurrence_kernel(xproj_ref, whh_ref, h_ref):
    """One grid step == one (batch tile, time chunk) of Tc recurrence steps.

    xproj_ref: (Tc, Tb, H) bf16   pre-projected inputs x_t @ W_ih^T + b_ih + b_hh
    whh_ref  : (H, H)      bf16   W_hh^T (constant across the grid)
    h_ref    : (Tb, H)     f32    running / final hidden state for this batch tile
                                  (output block; constant chunk index_map keeps it
                                  VMEM-resident across all chunks of the tile).
    """
    chunk = pl.program_id(1)

    @pl.when(chunk == 0)
    def _init():
        h_ref[...] = jnp.zeros_like(h_ref)

    tc = xproj_ref.shape[0]
    whh = whh_ref[...]  # bf16 (H, H); loaded once per chunk, reused by every step

    def step(t, h):
        # Single bf16 MXU push per time step on the serialized critical path;
        # accumulate in f32, keep the elementwise add + tanh in f32.
        hx = jnp.dot(h.astype(jnp.bfloat16), whh, preferred_element_type=jnp.float32)
        return jnp.tanh(xproj_ref[t].astype(jnp.float32) + hx)

    h_ref[...] = jax.lax.fori_loop(0, tc, step, h_ref[...], unroll=True)


def _choose_time_chunk(seq_len, batch_tile, hidden,
                       *, cap=32, vmem_budget_bytes=24 << 20):
    """VMEM-aware chunk size (bounds the unroll length too).

    Budget: 2 * Tc * Tb * H * 2  (bf16 xproj double buffer)
          + 2 * H * H * 2        (bf16 W_hh, default double-buffered)
          + Tb * H * 4           (f32 resident hidden state)
    """
    fixed = 2 * hidden * hidden * 2 + batch_tile * hidden * 4
    per_step = 2 * batch_tile * hidden * 2
    max_tc = max(1, (vmem_budget_bytes - fixed) // per_step)
    return int(max(1, min(cap, seq_len, max_tc)))


def _choose_batch_tile(batch):
    """Largest multiple-of-8 divisor of batch (or batch itself if small)."""
    if batch <= 8:
        return batch
    for tb in range(min(batch, 256), 7, -1):
        if batch % tb == 0 and tb % 8 == 0:
            return tb
    return batch


def rnn_forward(text, params, *, time_chunk=None, batch_tile=None):
    """Mirror of RNN.forward: fc(final hidden state)."""
    emb_table = params["embedding"]          # (vocab, E)
    w_ih_t = params["w_ih_t"]                # (E, H)
    w_hh_t = params["w_hh_t"]                # (H, H)
    b_ih = params["b_ih"]                    # (1, H)
    b_hh = params["b_hh"]                    # (1, H)
    w_fc_t = params["w_fc_t"]                # (H, O)
    b_fc = params["b_fc"]                    # (1, O)

    # Glue (plain JAX): embedding gather.
    embedded = emb_table[text]               # (S, B, E) float32

    S, B, E = embedded.shape
    H = w_hh_t.shape[0]

    # Hoisted, time-parallel input projection + fused biases (one big MXU GEMM,
    # off the serial path).  Stream it to the kernel in bf16 (half the HBM
    # traffic / VMEM double buffer; it is added pre-tanh so precision impact is tiny).
    xproj = (embedded.reshape(S * B, E) @ w_ih_t + (b_ih + b_hh)).reshape(S, B, H)
    xproj = xproj.astype(jnp.bfloat16)
    whh_bf16 = w_hh_t.astype(jnp.bfloat16)

    if batch_tile is None:
        batch_tile = _choose_batch_tile(B)
    assert B % batch_tile == 0, "batch_tile must divide the batch size"
    n_btiles = B // batch_tile

    if time_chunk is None:
        time_chunk = _choose_time_chunk(S, batch_tile, H)

    # Front-pad with zero rows up to a multiple of time_chunk: with h0 = 0 these
    # leading steps are exact no-ops (tanh(0) = 0), so the final hidden is unchanged.
    s_pad = ((S + time_chunk - 1) // time_chunk) * time_chunk
    if s_pad != S:
        pad = jnp.zeros((s_pad - S, B, H), xproj.dtype)
        xproj = jnp.concatenate([pad, xproj], axis=0)
    n_chunks = s_pad // time_chunk

    h_last = pl.pallas_call(
        rnn_recurrence_kernel,
        out_shape=jax.ShapeDtypeStruct((B, H), jnp.float32),
        grid_spec=pltpu.PrefetchScalarGridSpec(
            num_scalar_prefetch=0,
            grid=(n_btiles, n_chunks),
            in_specs=[
                # x_proj chunk for this (batch tile, time chunk)
                pl.BlockSpec((time_chunk, batch_tile, H), lambda b, c: (c, b, 0)),
                # W_hh^T, constant across the grid
                pl.BlockSpec((H, H), lambda b, c: (0, 0)),
            ],
            # Hidden state: constant across the chunk axis => VMEM-resident
            # accumulator, written back once per batch tile.
            out_specs=pl.BlockSpec((batch_tile, H), lambda b, c: (b, 0)),
        ),
        compiler_params=pltpu.CompilerParams(
            # batch tiles are independent (megacore-shardable); the recurrence
            # carry requires the chunk axis to stay sequential ("arbitrary").
            dimension_semantics=("parallel", "arbitrary"),
        ),
    )(xproj, whh_bf16)

    # Final FC in plain JAX (O is tiny / lane-sparse; keep kernel output dense).
    return h_last @ w_fc_t + b_fc


def init_params(key, input_dim, embedding_dim, hidden_dim, output_dim):
    """Deterministic synthetic parameters matching the PyTorch module shapes."""
    k = jax.random.split(key, 7)
    kH = 1.0 / jnp.sqrt(hidden_dim)
    return {
        # nn.Embedding(input_dim, embedding_dim): (vocab, E), N(0,1)
        "embedding": jax.random.normal(k[0], (input_dim, embedding_dim), jnp.float32),
        # nn.RNN(E, H): weight_ih_l0 (H, E), weight_hh_l0 (H, H), biases (H,)
        # stored pre-transposed for the x @ W^T convention.
        "w_ih_t": jax.random.uniform(k[1], (embedding_dim, hidden_dim), jnp.float32, -kH, kH),
        "w_hh_t": jax.random.uniform(k[2], (hidden_dim, hidden_dim), jnp.float32, -kH, kH),
        "b_ih": jax.random.uniform(k[3], (1, hidden_dim), jnp.float32, -kH, kH),
        "b_hh": jax.random.uniform(k[4], (1, hidden_dim), jnp.float32, -kH, kH),
        # nn.Linear(H, O): weight (O, H) -> stored transposed (H, O), bias (O,)
        "w_fc_t": jax.random.uniform(k[5], (hidden_dim, output_dim), jnp.float32, -kH, kH),
        "b_fc": jax.random.uniform(k[6], (1, output_dim), jnp.float32, -kH, kH),
    }


def rnn_forward_ref(text, params):
    """Pure-JAX f32 reference of the same forward pass (for correctness check)."""
    embedded = params["embedding"][text]                      # (S, B, E)

    def step(h, x_t):
        h_new = jnp.tanh(x_t @ params["w_ih_t"] + params["b_ih"]
                         + h @ params["w_hh_t"] + params["b_hh"])
        return h_new, None

    B = text.shape[1]
    H = params["w_hh_t"].shape[0]
    h0 = jnp.zeros((B, H), jnp.float32)
    h_last, _ = jax.lax.scan(step, h0, embedded)
    return h_last @ params["w_fc_t"] + params["b_fc"]


if __name__ == "__main__":
    # Small but hardware-aligned shapes: B multiple of 8 (sublanes),
    # H multiple of 128 (lanes).
    INPUT_DIM, EMB_DIM, HIDDEN_DIM, OUTPUT_DIM = 100, 64, 128, 4
    SEQ, BATCH = 16, 8

    key = jax.random.PRNGKey(0)
    k_param, k_text, k_text2 = jax.random.split(key, 3)
    params = init_params(k_param, INPUT_DIM, EMB_DIM, HIDDEN_DIM, OUTPUT_DIM)
    text = jax.random.randint(k_text, (SEQ, BATCH), 0, INPUT_DIM, dtype=jnp.int32)

    # bf16 MXU operands => loosen tolerances vs the f32 reference.
    ATOL = RTOL = 5e-2

    ref = rnn_forward_ref(text, params)

    # Default path (auto chunk; whole sequence in one chunk here, grid=(1,1)).
    out = rnn_forward(text, params)
    jax.block_until_ready(out)
    assert out.shape == (BATCH, OUTPUT_DIM)
    assert jnp.allclose(out, ref, atol=ATOL, rtol=RTOL), "mismatch vs reference (auto chunk)"

    # Multi-chunk path (grid=(1,4)): exercises the hidden-state carry across
    # grid iterations with the init gated by pl.when.
    out_chunked = rnn_forward(text, params, time_chunk=4)
    jax.block_until_ready(out_chunked)
    assert jnp.allclose(out_chunked, ref, atol=ATOL, rtol=RTOL), "mismatch vs reference (chunked)"

    # Awkward sequence length (S=13, time_chunk=8): exercises the zero front-padding
    # path (pads to 16 -> 2 chunks) with no numeric change.
    SEQ_ODD = 13
    text_odd = jax.random.randint(k_text2, (SEQ_ODD, BATCH), 0, INPUT_DIM, dtype=jnp.int32)
    ref_odd = rnn_forward_ref(text_odd, params)
    out_odd = rnn_forward(text_odd, params, time_chunk=8)
    jax.block_until_ready(out_odd)
    assert out_odd.shape == (BATCH, OUTPUT_DIM)
    assert jnp.allclose(out_odd, ref_odd, atol=ATOL, rtol=RTOL), "mismatch vs reference (padded)"

    print("KERNEL_OK")
</pallas_src>

<mosaic_0001>
module attributes {stable_mosaic.version = 11 : i64} {
  func.func @rnn_recurrence_kernel(%arg0: i32, %arg1: i32, %arg2: memref<16x8x128xbf16, #tpu.memory_space<vmem>>, %arg3: memref<128x128xbf16, #tpu.memory_space<vmem>>, %arg4: memref<8x128xf32, #tpu.memory_space<vmem>>) attributes {dimension_semantics = [#tpu.dimension_semantics<parallel>, #tpu.dimension_semantics<arbitrary>], iteration_bounds = array<i64: 1, 1>, scalar_prefetch = 0 : i64, scratch_operands = 0 : i64, tpu.core_type = #tpu.core_type<tc>, window_params = [{transform_indices = @transform_0, window_bounds = array<i64: 16, 8, 128>}, {pipeline_mode = #tpu.pipeline_mode<synchronous>, transform_indices = @transform_1, window_bounds = array<i64: 128, 128>}, {transform_indices = @transform_2, window_bounds = array<i64: 8, 128>}]} {
    %c0_i32 = arith.constant 0 : i32
    %0 = arith.cmpi eq, %arg1, %c0_i32 : i32
    %1 = arith.extui %0 : i1 to i32
    %c0_i32_0 = arith.constant 0 : i32
    %2 = arith.cmpi ne, %1, %c0_i32_0 : i32
    scf.if %2 {
      %cst_54 = arith.constant 0.000000e+00 : f32
      %134 = vector.broadcast %cst_54 : f32 to vector<8x128xf32>
      %c0_55 = arith.constant 0 : index
      %c0_56 = arith.constant 0 : index
      %135 = vector.load %arg4[%c0_55, %c0_56] : memref<8x128xf32, #tpu.memory_space<vmem>>, vector<8x128xf32>
      tpu.vector_store %arg4[%c0_55, %c0_56], %134 {strides = array<i32>} : memref<8x128xf32, #tpu.memory_space<vmem>>, vector<8x128xf32>,
    } else {
    }
    %c0 = arith.constant 0 : index
    %c0_1 = arith.constant 0 : index
    %3 = vector.load %arg3[%c0, %c0_1] : memref<128x128xbf16, #tpu.memory_space<vmem>>, vector<128x128xbf16>
    %c0_2 = arith.constant 0 : index
    %c0_3 = arith.constant 0 : index
    %4 = vector.load %arg4[%c0_2, %c0_3] : memref<8x128xf32, #tpu.memory_space<vmem>>, vector<8x128xf32>
    %c0_i32_4 = arith.constant 0 : i32
    %5 = arith.truncf %4 : vector<8x128xf32> to vector<8x128xbf16>
    %cst = arith.constant dense<0.000000e+00> : vector<8x128xf32>
    %6 = tpu.matmul %5, %3, %cst {dimension_numbers = #tpu.dot_dimension_numbers<[1], [0], [0], [1], [0, 0, 1, 1], [], []>} : vector<8x128xbf16>, vector<128x128xbf16>, vector<8x128xf32> -> vector<8x128xf32>
    %7 = arith.index_cast %c0_i32_4 : i32 to index
    %c0_5 = arith.constant 0 : index
    %c0_6 = arith.constant 0 : index
    %8 = vector.load %arg2[%7, %c0_5, %c0_6] : memref<16x8x128xbf16, #tpu.memory_space<vmem>>, vector<1x8x128xbf16>
    %9 = vector.shape_cast %8 : vector<1x8x128xbf16> to vector<8x128xbf16>
    %10 = arith.extf %9 : vector<8x128xbf16> to vector<8x128xf32>
    %11 = arith.addf %10, %6 : vector<8x128xf32>
    %12 = math.tanh %11 : vector<8x128xf32>
    %c1_i32 = arith.constant 1 : i32
    %13 = arith.truncf %12 : vector<8x128xf32> to vector<8x128xbf16>
    %cst_7 = arith.constant dense<0.000000e+00> : vector<8x128xf32>
    %14 = tpu.matmul %13, %3, %cst_7 {dimension_numbers = #tpu.dot_dimension_numbers<[1], [0], [0], [1], [0, 0, 1, 1], [], []>} : vector<8x128xbf16>, vector<128x128xbf16>, vector<8x128xf32> -> vector<8x128xf32>
    %15 = arith.index_cast %c1_i32 : i32 to index
    %c0_8 = arith.constant 0 : index
    %c0_9 = arith.constant 0 : index
    %16 = vector.load %arg2[%15, %c0_8, %c0_9] : memref<16x8x128xbf16, #tpu.memory_space<vmem>>, vector<1x8x128xbf16>
    %17 = vector.shape_cast %16 : vector<1x8x128xbf16> to vector<8x128xbf16>
    %18 = arith.extf %17 : vector<8x128xbf16> to vector<8x128xf32>
    %19 = arith.addf %18, %14 : vector<8x128xf32>
    %20 = math.tanh %19 : vector<8x128xf32>
    %c2_i32 = arith.constant 2 : i32
    %21 = arith.truncf %20 : vector<8x128xf32> to vector<8x128xbf16>
    %cst_10 = arith.constant dense<0.000000e+00> : vector<8x128xf32>
    %22 = tpu.matmul %21, %3, %cst_10 {dimension_numbers = #tpu.dot_dimension_numbers<[1], [0], [0], [1], [0, 0, 1, 1], [], []>} : vector<8x128xbf16>, vector<128x128xbf16>, vector<8x128xf32> -> vector<8x128xf32>
    %23 = arith.index_cast %c2_i32 : i32 to index
    %c0_11 = arith.constant 0 : index
    %c0_12 = arith.constant 0 : index
    %24 = vector.load %arg2[%23, %c0_11, %c0_12] : memref<16x8x128xbf16, #tpu.memory_space<vmem>>, vector<1x8x128xbf16>
    %25 = vector.shape_cast %24 : vector<1x8x128xbf16> to vector<8x128xbf16>
    %26 = arith.extf %25 : vector<8x128xbf16> to vector<8x128xf32>
    %27 = arith.addf %26, %22 : vector<8x128xf32>
    %28 = math.tanh %27 : vector<8x128xf32>
    %c3_i32 = arith.constant 3 : i32
    %29 = arith.truncf %28 : vector<8x128xf32> to vector<8x128xbf16>
    %cst_13 = arith.constant dense<0.000000e+00> : vector<8x128xf32>
    %30 = tpu.matmul %29, %3, %cst_13 {dimension_numbers = #tpu.dot_dimension_numbers<[1], [0], [0], [1], [0, 0, 1, 1], [], []>} : vector<8x128xbf16>, vector<128x128xbf16>, vector<8x128xf32> -> vector<8x128xf32>
    %31 = arith.index_cast %c3_i32 : i32 to index
    %c0_14 = arith.constant 0 : index
    %c0_15 = arith.constant 0 : index
    %32 = vector.load %arg2[%31, %c0_14, %c0_15] : memref<16x8x128xbf16, #tpu.memory_space<vmem>>, vector<1x8x128xbf16>
    %33 = vector.shape_cast %32 : vector<1x8x128xbf16> to vector<8x128xbf16>
    %34 = arith.extf %33 : vector<8x128xbf16> to vector<8x128xf32>
    %35 = arith.addf %34, %30 : vector<8x128xf32>
    %36 = math.tanh %35 : vector<8x128xf32>
    %c4_i32 = arith.constant 4 : i32
    %37 = arith.truncf %36 : vector<8x128xf32> to vector<8x128xbf16>
    %cst_16 = arith.constant dense<0.000000e+00> : vector<8x128xf32>
    %38 = tpu.matmul %37, %3, %cst_16 {dimension_numbers = #tpu.dot_dimension_numbers<[1], [0], [0], [1], [0, 0, 1, 1], [], []>} : vector<8x128xbf16>, vector<128x128xbf16>, vector<8x128xf32> -> vector<8x128xf32>
    %39 = arith.index_cast %c4_i32 : i32 to index
    %c0_17 = arith.constant 0 : index
    %c0_18 = arith.constant 0 : index
    %40 = vector.load %arg2[%39, %c0_17, %c0_18] : memref<16x8x128xbf16, #tpu.memory_space<vmem>>, vector<1x8x128xbf16>
    %41 = vector.shape_cast %40 : vector<1x8x128xbf16> to vector<8x128xbf16>
    %42 = arith.extf %41 : vector<8x128xbf16> to vector<8x128xf32>
    %43 = arith.addf %42, %38 : vector<8x128xf32>
    %44 = math.tanh %43 : vector<8x128xf32>
    %c5_i32 = arith.constant 5 : i32
    %45 = arith.truncf %44 : vector<8x128xf32> to vector<8x128xbf16>
    %cst_19 = arith.constant dense<0.000000e+00> : vector<8x128xf32>
    %46 = tpu.matmul %45, %3, %cst_19 {dimension_numbers = #tpu.dot_dimension_numbers<[1], [0], [0], [1], [0, 0, 1, 1], [], []>} : vector<8x128xbf16>, vector<128x128xbf16>, vector<8x128xf32> -> vector<8x128xf32>
    %47 = arith.index_cast %c5_i32 : i32 to index
    %c0_20 = arith.constant 0 : index
    %c0_21 = arith.constant 0 : index
    %48 = vector.load %arg2[%47, %c0_20, %c0_21] : memref<16x8x128xbf16, #tpu.memory_space<vmem>>, vector<1x8x128xbf16>
    %49 = vector.shape_cast %48 : vector<1x8x128xbf16> to vector<8x128xbf16>
    %50 = arith.extf %49 : vector<8x128xbf16> to vector<8x128xf32>
    %51 = arith.addf %50, %46 : vector<8x128xf32>
    %52 = math.tanh %51 : vector<8x128xf32>
    %c6_i32 = arith.constant 6 : i32
    %53 = arith.truncf %52 : vector<8x128xf32> to vector<8x128xbf16>
    %cst_22 = arith.constant dense<0.000000e+00> : vector<8x128xf32>
    %54 = tpu.matmul %53, %3, %cst_22 {dimension_numbers = #tpu.dot_dimension_numbers<[1], [0], [0], [1], [0, 0, 1, 1], [], []>} : vector<8x128xbf16>, vector<128x128xbf16>, vector<8x128xf32> -> vector<8x128xf32>
    %55 = arith.index_cast %c6_i32 : i32 to index
    %c0_23 = arith.constant 0 : index
    %c0_24 = arith.constant 0 : index
    %56 = vector.load %arg2[%55, %c0_23, %c0_24] : memref<16x8x128xbf16, #tpu.memory_space<vmem>>, vector<1x8x128xbf16>
    %57 = vector.shape_cast %56 : vector<1x8x128xbf16> to vector<8x128xbf16>
    %58 = arith.extf %57 : vector<8x128xbf16> to vector<8x128xf32>
    %59 = arith.addf %58, %54 : vector<8x128xf32>
    %60 = math.tanh %59 : vector<8x128xf32>
    %c7_i32 = arith.constant 7 : i32
    %61 = arith.truncf %60 : vector<8x128xf32> to vector<8x128xbf16>
    %cst_25 = arith.constant dense<0.000000e+00> : vector<8x128xf32>
    %62 = tpu.matmul %61, %3, %cst_25 {dimension_numbers = #tpu.dot_dimension_numbers<[1], [0], [0], [1], [0, 0, 1, 1], [], []>} : vector<8x128xbf16>, vector<128x128xbf16>, vector<8x128xf32> -> vector<8x128xf32>
    %63 = arith.index_cast %c7_i32 : i32 to index
    %c0_26 = arith.constant 0 : index
    %c0_27 = arith.constant 0 : index
    %64 = vector.load %arg2[%63, %c0_26, %c0_27] : memref<16x8x128xbf16, #tpu.memory_space<vmem>>, vector<1x8x128xbf16>
    %65 = vector.shape_cast %64 : vector<1x8x128xbf16> to vector<8x128xbf16>
    %66 = arith.extf %65 : vector<8x128xbf16> to vector<8x128xf32>
    %67 = arith.addf %66, %62 : vector<8x128xf32>
    %68 = math.tanh %67 : vector<8x128xf32>
    %c8_i32 = arith.constant 8 : i32
    %69 = arith.truncf %68 : vector<8x128xf32> to vector<8x128xbf16>
    %cst_28 = arith.constant dense<0.000000e+00> : vector<8x128xf32>
    %70 = tpu.matmul %69, %3, %cst_28 {dimension_numbers = #tpu.dot_dimension_numbers<[1], [0], [0], [1], [0, 0, 1, 1], [], []>} : vector<8x128xbf16>, vector<128x128xbf16>, vector<8x128xf32> -> vector<8x128xf32>
    %71 = arith.index_cast %c8_i32 : i32 to index
    %c0_29 = arith.constant 0 : index
    %c0_30 = arith.constant 0 : index
    %72 = vector.load %arg2[%71, %c0_29, %c0_30] : memref<16x8x128xbf16, #tpu.memory_space<vmem>>, vector<1x8x128xbf16>
    %73 = vector.shape_cast %72 : vector<1x8x128xbf16> to vector<8x128xbf16>
    %74 = arith.extf %73 : vector<8x128xbf16> to vector<8x128xf32>
    %75 = arith.addf %74, %70 : vector<8x128xf32>
    %76 = math.tanh %75 : vector<8x128xf32>
    %c9_i32 = arith.constant 9 : i32
    %77 = arith.truncf %76 : vector<8x128xf32> to vector<8x128xbf16>
    %cst_31 = arith.constant dense<0.000000e+00> : vector<8x128xf32>
    %78 = tpu.matmul %77, %3, %cst_31 {dimension_numbers = #tpu.dot_dimension_numbers<[1], [0], [0], [1], [0, 0, 1, 1], [], []>} : vector<8x128xbf16>, vector<128x128xbf16>, vector<8x128xf32> -> vector<8x128xf32>
    %79 = arith.index_cast %c9_i32 : i32 to index
    %c0_32 = arith.constant 0 : index
    %c0_33 = arith.constant 0 : index
    %80 = vector.load %arg2[%79, %c0_32, %c0_33] : memref<16x8x128xbf16, #tpu.memory_space<vmem>>, vector<1x8x128xbf16>
    %81 = vector.shape_cast %80 : vector<1x8x128xbf16> to vector<8x128xbf16>
    %82 = arith.extf %81 : vector<8x128xbf16> to vector<8x128xf32>
    %83 = arith.addf %82, %78 : vector<8x128xf32>
    %84 = math.tanh %83 : vector<8x128xf32>
    %c10_i32 = arith.constant 10 : i32
    %85 = arith.truncf %84 : vector<8x128xf32> to vector<8x128xbf16>
    %cst_34 = arith.constant dense<0.000000e+00> : vector<8x128xf32>
    %86 = tpu.matmul %85, %3, %cst_34 {dimension_numbers = #tpu.dot_dimension_numbers<[1], [0], [0], [1], [0, 0, 1, 1], [], []>} : vector<8x128xbf16>, vector<128x128xbf16>, vector<8x128xf32> -> vector<8x128xf32>
    %87 = arith.index_cast %c10_i32 : i32 to index
    %c0_35 = arith.constant 0 : index
    %c0_36 = arith.constant 0 : index
    %88 = vector.load %arg2[%87, %c0_35, %c0_36] : memref<16x8x128xbf16, #tpu.memory_space<vmem>>, vector<1x8x128xbf16>
    %89 = vector.shape_cast %88 : vector<1x8x128xbf16> to vector<8x128xbf16>
    %90 = arith.extf %89 : vector<8x128xbf16> to vector<8x128xf32>
    %91 = arith.addf %90, %86 : vector<8x128xf32>
    %92 = math.tanh %91 : vector<8x128xf32>
    %c11_i32 = arith.constant 11 : i32
    %93 = arith.truncf %92 : vector<8x128xf32> to vector<8x128xbf16>
    %cst_37 = arith.constant dense<0.000000e+00> : vector<8x128xf32>
    %94 = tpu.matmul %93, %3, %cst_37 {dimension_numbers = #tpu.dot_dimension_numbers<[1], [0], [0], [1], [0, 0, 1, 1], [], []>} : vector<8x128xbf16>, vector<128x128xbf16>, vector<8x128xf32> -> vector<8x128xf32>
    %95 = arith.index_cast %c11_i32 : i32 to index
    %c0_38 = arith.constant 0 : index
    %c0_39 = arith.constant 0 : index
    %96 = vector.load %arg2[%95, %c0_38, %c0_39] : memref<16x8x128xbf16, #tpu.memory_space<vmem>>, vector<1x8x128xbf16>
    %97 = vector.shape_cast %96 : vector<1x8x128xbf16> to vector<8x128xbf16>
    %98 = arith.extf %97 : vector<8x128xbf16> to vector<8x128xf32>
    %99 = arith.addf %98, %94 : vector<8x128xf32>
    %100 = math.tanh %99 : vector<8x128xf32>
    %c12_i32 = arith.constant 12 : i32
    %101 = arith.truncf %100 : vector<8x128xf32> to vector<8x128xbf16>
    %cst_40 = arith.constant dense<0.000000e+00> : vector<8x128xf32>
    %102 = tpu.matmul %101, %3, %cst_40 {dimension_numbers = #tpu.dot_dimension_numbers<[1], [0], [0], [1], [0, 0, 1, 1], [], []>} : vector<8x128xbf16>, vector<128x128xbf16>, vector<8x128xf32> -> vector<8x128xf32>
    %103 = arith.index_cast %c12_i32 : i32 to index
    %c0_41 = arith.constant 0 : index
    %c0_42 = arith.constant 0 : index
    %104 = vector.load %arg2[%103, %c0_41, %c0_42] : memref<16x8x128xbf16, #tpu.memory_space<vmem>>, vector<1x8x128xbf16>
    %105 = vector.shape_cast %104 : vector<1x8x128xbf16> to vector<8x128xbf16>
    %106 = arith.extf %105 : vector<8x128xbf16> to vector<8x128xf32>
    %107 = arith.addf %106, %102 : vector<8x128xf32>
    %108 = math.tanh %107 : vector<8x128xf32>
    %c13_i32 = arith.constant 13 : i32
    %109 = arith.truncf %108 : vector<8x128xf32> to vector<8x128xbf16>
    %cst_43 = arith.constant dense<0.000000e+00> : vector<8x128xf32>
    %110 = tpu.matmul %109, %3, %cst_43 {dimension_numbers = #tpu.dot_dimension_numbers<[1], [0], [0], [1], [0, 0, 1, 1], [], []>} : vector<8x128xbf16>, vector<128x128xbf16>, vector<8x128xf32> -> vector<8x128xf32>
    %111 = arith.index_cast %c13_i32 : i32 to index
    %c0_44 = arith.constant 0 : index
    %c0_45 = arith.constant 0 : index
    %112 = vector.load %arg2[%111, %c0_44, %c0_45] : memref<16x8x128xbf16, #tpu.memory_space<vmem>>, vector<1x8x128xbf16>
    %113 = vector.shape_cast %112 : vector<1x8x128xbf16> to vector<8x128xbf16>
    %114 = arith.extf %113 : vector<8x128xbf16> to vector<8x128xf32>
    %115 = arith.addf %114, %110 : vector<8x128xf32>
    %116 = math.tanh %115 : vector<8x128xf32>
    %c14_i32 = arith.constant 14 : i32
    %117 = arith.truncf %116 : vector<8x128xf32> to vector<8x128xbf16>
    %cst_46 = arith.constant dense<0.000000e+00> : vector<8x128xf32>
    %118 = tpu.matmul %117, %3, %cst_46 {dimension_numbers = #tpu.dot_dimension_numbers<[1], [0], [0], [1], [0, 0, 1, 1], [], []>} : vector<8x128xbf16>, vector<128x128xbf16>, vector<8x128xf32> -> vector<8x128xf32>
    %119 = arith.index_cast %c14_i32 : i32 to index
    %c0_47 = arith.constant 0 : index
    %c0_48 = arith.constant 0 : index
    %120 = vector.load %arg2[%119, %c0_47, %c0_48] : memref<16x8x128xbf16, #tpu.memory_space<vmem>>, vector<1x8x128xbf16>
    %121 = vector.shape_cast %120 : vector<1x8x128xbf16> to vector<8x128xbf16>
    %122 = arith.extf %121 : vector<8x128xbf16> to vector<8x128xf32>
    %123 = arith.addf %122, %118 : vector<8x128xf32>
    %124 = math.tanh %123 : vector<8x128xf32>
    %c15_i32 = arith.constant 15 : i32
    %125 = arith.truncf %124 : vector<8x128xf32> to vector<8x128xbf16>
    %cst_49 = arith.constant dense<0.000000e+00> : vector<8x128xf32>
    %126 = tpu.matmul %125, %3, %cst_49 {dimension_numbers = #tpu.dot_dimension_numbers<[1], [0], [0], [1], [0, 0, 1, 1], [], []>} : vector<8x128xbf16>, vector<128x128xbf16>, vector<8x128xf32> -> vector<8x128xf32>
    %127 = arith.index_cast %c15_i32 : i32 to index
    %c0_50 = arith.constant 0 : index
    %c0_51 = arith.constant 0 : index
    %128 = vector.load %arg2[%127, %c0_50, %c0_51] : memref<16x8x128xbf16, #tpu.memory_space<vmem>>, vector<1x8x128xbf16>
    %129 = vector.shape_cast %128 : vector<1x8x128xbf16> to vector<8x128xbf16>
    %130 = arith.extf %129 : vector<8x128xbf16> to vector<8x128xf32>
    %131 = arith.addf %130, %126 : vector<8x128xf32>
    %132 = math.tanh %131 : vector<8x128xf32>
    %c16_i32 = arith.constant 16 : i32
    %c0_52 = arith.constant 0 : index
    %c0_53 = arith.constant 0 : index
    %133 = vector.load %arg4[%c0_52, %c0_53] : memref<8x128xf32, #tpu.memory_space<vmem>>, vector<8x128xf32>
    tpu.vector_store %arg4[%c0_52, %c0_53], %132 {strides = array<i32>} : memref<8x128xf32, #tpu.memory_space<vmem>>, vector<8x128xf32>,
    return
  }
  func.func @transform_0(%arg0: i32, %arg1: i32) -> (i32, i32, i32) {
    %c0_i32 = arith.constant 0 : i32
    %c0_i32_0 = arith.constant 0 : i32
    return %arg1, %arg0, %c0_i32 : i32, i32, i32
  }
  func.func @transform_1(%arg0: i32, %arg1: i32) -> (i32, i32) {
    %c0_i32 = arith.constant 0 : i32
    %c0_i32_0 = arith.constant 0 : i32
    %c0_i32_1 = arith.constant 0 : i32
    return %c0_i32, %c0_i32_0 : i32, i32
  }
  func.func @transform_2(%arg0: i32, %arg1: i32) -> (i32, i32) {
    %c0_i32 = arith.constant 0 : i32
    %c0_i32_0 = arith.constant 0 : i32
    return %arg0, %c0_i32 : i32, i32
  }
}

</mosaic_0001>

<llo_original>
// kernel: tpu_custom_call.1
$region0: #{tpu_custom_call.1}
  #allocation0 [shape = 'u32[]', space=smem, size = 0x4, offset = 0x4, fixed_abs, tag = 'smem constant byte address 0x4 - core index']
  #allocation1 [shape = 'u32[144,128]{1,0:T(1,128)}', space=vmem, size = 0x12000, scoped, tag = 'internal scratch']
  %s0 = inlined_call_operand.hbm [shape: bf16[16,8,128], index: 0, kind: input, shape index: {}]
  %s1 = inlined_call_operand.hbm [shape: bf16[128,128], index: 1, kind: input, shape index: {}]
  %s2 = inlined_call_operand.hbm [shape: f32[8,128], index: 2, kind: output, shape index: {}]
  %s3 = sld [smem:[#allocation0]]
  $region30: #{tpu_custom_call.1} parent=0
    _
  %s5 = ssub.s32 1, %s3
  %s6 = scalar_select 0, %s5, %s3
  $region1: #{tpu_custom_call.1} parent=0
    #allocation2 [shape = 'u8[32768]{0}', space=vmem, size = 0x8000, scoped, tag = 'input window, operand 0, single buffered']
    #allocation3 [shape = 's32[1]{0}', space=sflag, size = 0x4, scoped, tag = 'scoped memory for tpu_custom_call.1']
    #allocation4 [shape = 's32[1]{0}', space=sflag, size = 0x4, scoped, tag = 'scoped memory for tpu_custom_call.1']
    #allocation5 [shape = 'u8[32768]{0}', space=vmem, size = 0x8000, scoped, tag = 'input window, operand 1, single buffered']
    #allocation6 [shape = 's32[1]{0}', space=sflag, size = 0x4, scoped, tag = 'scoped memory for tpu_custom_call.1']
    #allocation7 [shape = 'u8[4096]{0}', space=vmem, size = 0x1000, scoped, tag = 'output window, operand 0, single buffered']
    %7 = vsyncpa [#allocation3], 0
    %8 = vsyncpa [#allocation6], 0
    %9 = vsyncpa [#allocation4], 0
    // Predicated region
    $region2: #{tpu_custom_call.1} parent=1 // pred_check
      _
    $region3: #{tpu_custom_call.1} parent=1 // pred_check_branch
      %11 = sbr.rel (0) target = $region5
    $region4: #{tpu_custom_call.1} parent=1 // pred_region
      %s13 = ssub.s32 1024, 1024
      %14 = vsyncadd [#allocation3], %s13
      %s15 = sshll.u32 [#allocation2], 4
      %s16 = int_to_ptr.vmem [resolvable:$true] %s15
      %21 = dma.hbm_to_vmem [thread:$0]  %s0, 1024, %s16, [#allocation3], 64, 64, 4
    $region5: #{tpu_custom_call.1} parent=1 // pred_fallthru
      _
    // Predicated region
    $region6: #{tpu_custom_call.1} parent=1 // pred_check
      _
    $region7: #{tpu_custom_call.1} parent=1 // pred_check_branch
      %23 = sbr.rel (0) target = $region9
    $region8: #{tpu_custom_call.1} parent=1 // pred_region
      %s25 = ssub.s32 1024, 1024
      %26 = vsyncadd [#allocation6], %s25
      %s27 = sshll.u32 [#allocation5], 4
      %s28 = int_to_ptr.vmem [resolvable:$true] %s27
      %33 = dma.hbm_to_vmem [thread:$0]  %s1, 1024, %s28, [#allocation6], 64, 64, 4
    $region9: #{tpu_custom_call.1} parent=1 // pred_fallthru
      _
    // Predicated region
    $region10: #{tpu_custom_call.1} parent=1 // pred_check
      _
    $region11: #{tpu_custom_call.1} parent=1 // pred_check_branch
      %35 = sbr.rel (0) target = $region13
    $region12: #{tpu_custom_call.1} parent=1 // pred_region
      %36 = dma.done [#allocation3], 1024
    $region13: #{tpu_custom_call.1} parent=1 // pred_fallthru
      _
    // Predicated region
    $region14: #{tpu_custom_call.1} parent=1 // pred_check
      _
    $region15: #{tpu_custom_call.1} parent=1 // pred_check_branch
      %38 = sbr.rel (0) target = $region17
    $region16: #{tpu_custom_call.1} parent=1 // pred_region
      %39 = dma.done [#allocation6], 1024
    $region17: #{tpu_custom_call.1} parent=1 // pred_fallthru
      _
    %p41 = scmp.eq.s32.totalorder 0, 0
    // Predicated region
    $region18: #{tpu_custom_call.1} parent=1 // pred_check
      %p42 = pneg %p41
    $region19: #{tpu_custom_call.1} parent=1 // pred_check_branch
      %44 = sbr.rel (%p42) target = $region21
    $region20: #{tpu_custom_call.1} parent=1 // pred_region
      %45 = vst [vmem:[#allocation7] sm:$0xff] 0.0
    $region21: #{tpu_custom_call.1} parent=1 // pred_fallthru
      _
    %v46 = vld [vmem:[#allocation5] sm:$0xf]
    %v47 = vld [vmem:[#allocation5 + $0x4] sm:$0xf]
    %v48 = vld [vmem:[#allocation5 + $0x8] sm:$0xf]
    %v49 = vld [vmem:[#allocation5 + $0xc] sm:$0xf]
    %v50 = vld [vmem:[#allocation5 + $0x10] sm:$0xf]
    %v51 = vld [vmem:[#allocation5 + $0x14] sm:$0xf]
    %v52 = vld [vmem:[#allocation5 + $0x18] sm:$0xf]
    %v53 = vld [vmem:[#allocation5 + $0x1c] sm:$0xf]
    %v54 = vld [vmem:[#allocation5 + $0x20] sm:$0xf]
    %v55 = vld [vmem:[#allocation5 + $0x24] sm:$0xf]
    %v56 = vld [vmem:[#allocation5 + $0x28] sm:$0xf]
    %v57 = vld [vmem:[#allocation5 + $0x2c] sm:$0xf]
    %v58 = vld [vmem:[#allocation5 + $0x30] sm:$0xf]
    %v59 = vld [vmem:[#allocation5 + $0x34] sm:$0xf]
    %v60 = vld [vmem:[#allocation5 + $0x38] sm:$0xf]
    %v61 = vld [vmem:[#allocation5 + $0x3c] sm:$0xf]
    %v62 = vld [vmem:[#allocation7] sm:$0xff]
    %v63 = vpack.c.bf16 %v62, %v62
    %v80 = vunpack.c.l.b16 %v46
    %v81 = vunpack.c.l.b16 %v47
    %v82 = vunpack.c.l.b16 %v48
    %v83 = vunpack.c.l.b16 %v49
    %v84 = vunpack.c.l.b16 %v50
    %v85 = vunpack.c.l.b16 %v51
    %v86 = vunpack.c.l.b16 %v52
    %v87 = vunpack.c.l.b16 %v53
    %v88 = vunpack.c.l.b16 %v54
    %v89 = vunpack.c.l.b16 %v55
    %v90 = vunpack.c.l.b16 %v56
    %v91 = vunpack.c.l.b16 %v57
    %v92 = vunpack.c.l.b16 %v58
    %v93 = vunpack.c.l.b16 %v59
    %v94 = vunpack.c.l.b16 %v60
    %v95 = vunpack.c.l.b16 %v61
    %v96 = vpack.c.b16 %v81, %v80
    %v97 = vpack.c.b16 %v83, %v82
    %v98 = vpack.c.b16 %v85, %v84
    %v99 = vpack.c.b16 %v87, %v86
    %v100 = vpack.c.b16 %v89, %v88
    %v101 = vpack.c.b16 %v91, %v90
    %v102 = vpack.c.b16 %v93, %v92
    %v103 = vpack.c.b16 %v95, %v94
    %112 = vmatprep.subr.bf16.mxu0 0
    %113 = vmatpush1.bf16.msra.mxu0 %v96
    %114 = vmatprep.subr.bf16.mxu0 0
    %115 = vmatpush1.bf16.msra.mxu0 %v97
    %116 = vmatprep.subr.bf16.mxu0 0
    %117 = vmatpush1.bf16.msra.mxu0 %v98
    %118 = vmatprep.subr.bf16.mxu0 0
    %119 = vmatpush1.bf16.msra.mxu0 %v99
    %120 = vmatprep.subr.bf16.mxu0 0
    %121 = vmatpush1.bf16.msra.mxu0 %v100
    %122 = vmatprep.subr.bf16.mxu0 0
    %123 = vmatpush1.bf16.msra.mxu0 %v101
    %124 = vmatprep.subr.bf16.mxu0 0
    %125 = vmatpush1.bf16.msra.mxu0 %v102
    %126 = vmatprep.subr.bf16.mxu0 0
    %127 = vmatpush1.bf16.msra.mxu0 %v103
    %128 = vmatprep.subr.bf16.mxu0 0
    %129 = vmatpush1.bf16.msra.mxu0 0
    %130 = vmatprep.subr.bf16.mxu0 0
    %131 = vmatpush1.bf16.msra.mxu0 0
    %132 = vmatprep.subr.bf16.mxu0 0
    %133 = vmatpush1.bf16.msra.mxu0 0
    %134 = vmatprep.subr.bf16.mxu0 0
    %135 = vmatpush1.bf16.msra.mxu0 0
    %136 = vmatprep.subr.bf16.mxu0 0
    %137 = vmatpush1.bf16.msra.mxu0 0
    %138 = vmatprep.subr.bf16.mxu0 0
    %139 = vmatpush1.bf16.msra.mxu0 0
    %140 = vmatprep.subr.bf16.mxu0 0
    %141 = vmatpush1.bf16.msra.mxu0 0
    %142 = vmatprep.subr.bf16.mxu0 0
    %143 = vmatpush1.bf16.msra.mxu0 0
    %144 = vmatprep.mubr.bf16.mxu0 0
    %145 = vmatmul.mubr.bf16.gmra.mrb[0].mxu0 %v63
    %v146 = vpop.f32.mrb[0].mxu0
    %v147 = vadd.f32 0.0, %v146
    %v148 = vpop.f32.mrb[0].mxu0
    %v149 = vpop.f32.mrb[0].mxu0
    %v150 = vpop.f32.mrb[0].mxu0
    %151 = vdwg.mxu0
    %v152 = vld [vmem:[#allocation2] sm:$0xf]
    %v153 = vunpack.c.l.bf16 %v152
    %v154 = vadd.f32 %v153, %v147
    %v155 = vtanh.pop %v154
    %v156 = vpack.c.bf16 %v155, %v155
    %157 = vmatprep.subr.bf16.mxu0 0
    %158 = vmatpush1.bf16.msra.mxu0 %v96
    %159 = vmatprep.subr.bf16.mxu0 0
    %160 = vmatpush1.bf16.msra.mxu0 %v97
    %161 = vmatprep.subr.bf16.mxu0 0
    %162 = vmatpush1.bf16.msra.mxu0 %v98
    %163 = vmatprep.subr.bf16.mxu0 0
    %164 = vmatpush1.bf16.msra.mxu0 %v99
    %165 = vmatprep.subr.bf16.mxu0 0
    %166 = vmatpush1.bf16.msra.mxu0 %v100
    %167 = vmatprep.subr.bf16.mxu0 0
    %168 = vmatpush1.bf16.msra.mxu0 %v101
    %169 = vmatprep.subr.bf16.mxu0 0
    %170 = vmatpush1.bf16.msra.mxu0 %v102
    %171 = vmatprep.subr.bf16.mxu0 0
    %172 = vmatpush1.bf16.msra.mxu0 %v103
    %173 = vmatprep.subr.bf16.mxu0 0
    %174 = vmatpush1.bf16.msra.mxu0 0
    %175 = vmatprep.subr.bf16.mxu0 0
    %176 = vmatpush1.bf16.msra.mxu0 0
    %177 = vmatprep.subr.bf16.mxu0 0
    %178 = vmatpush1.bf16.msra.mxu0 0
    %179 = vmatprep.subr.bf16.mxu0 0
    %180 = vmatpush1.bf16.msra.mxu0 0
    %181 = vmatprep.subr.bf16.mxu0 0
    %182 = vmatpush1.bf16.msra.mxu0 0
    %183 = vmatprep.subr.bf16.mxu0 0
    %184 = vmatpush1.bf16.msra.mxu0 0
    %185 = vmatprep.subr.bf16.mxu0 0
    %186 = vmatpush1.bf16.msra.mxu0 0
    %187 = vmatprep.subr.bf16.mxu0 0
    %188 = vmatpush1.bf16.msra.mxu0 0
    %189 = vmatprep.mubr.bf16.mxu0 0
    %190 = vmatmul.mubr.bf16.gmra.mrb[0].mxu0 %v156
    %v191 = vpop.f32.mrb[0].mxu0
    %v192 = vadd.f32 0.0, %v191
    %v193 = vpop.f32.mrb[0].mxu0
    %v194 = vpop.f32.mrb[0].mxu0
    %v195 = vpop.f32.mrb[0].mxu0
    %196 = vdwg.mxu0
    %s197 = scalar_lea.vmem [#allocation2], 4
    %v198 = vld [vmem:[%s197] sm:$0xf]
    %v199 = vunpack.c.l.bf16 %v198
    %v200 = vadd.f32 %v199, %v192
    %v201 = vtanh.pop %v200
    %v202 = vpack.c.bf16 %v201, %v201
    %203 = vmatprep.subr.bf16.mxu0 0
    %204 = vmatpush1.bf16.msra.mxu0 %v96
    %205 = vmatprep.subr.bf16.mxu0 0
    %206 = vmatpush1.bf16.msra.mxu0 %v97
    %207 = vmatprep.subr.bf16.mxu0 0
    %208 = vmatpush1.bf16.msra.mxu0 %v98
    %209 = vmatprep.subr.bf16.mxu0 0
    %210 = vmatpush1.bf16.msra.mxu0 %v99
    %211 = vmatprep.subr.bf16.mxu0 0
    %212 = vmatpush1.bf16.msra.mxu0 %v100
    %213 = vmatprep.subr.bf16.mxu0 0
    %214 = vmatpush1.bf16.msra.mxu0 %v101
    %215 = vmatprep.subr.bf16.mxu0 0
    %216 = vmatpush1.bf16.msra.mxu0 %v102
    %217 = vmatprep.subr.bf16.mxu0 0
    %218 = vmatpush1.bf16.msra.mxu0 %v103
    %219 = vmatprep.subr.bf16.mxu0 0
    %220 = vmatpush1.bf16.msra.mxu0 0
    %221 = vmatprep.subr.bf16.mxu0 0
    %222 = vmatpush1.bf16.msra.mxu0 0
    %223 = vmatprep.subr.bf16.mxu0 0
    %224 = vmatpush1.bf16.msra.mxu0 0
    %225 = vmatprep.subr.bf16.mxu0 0
    %226 = vmatpush1.bf16.msra.mxu0 0
    %227 = vmatprep.subr.bf16.mxu0 0
    %228 = vmatpush1.bf16.msra.mxu0 0
    %229 = vmatprep.subr.bf16.mxu0 0
    %230 = vmatpush1.bf16.msra.mxu0 0
    %231 = vmatprep.subr.bf16.mxu0 0
    %232 = vmatpush1.bf16.msra.mxu0 0
    %233 = vmatprep.subr.bf16.mxu0 0
    %234 = vmatpush1.bf16.msra.mxu0 0
    %235 = vmatprep.mubr.bf16.mxu0 0
    %236 = vmatmul.mubr.bf16.gmra.mrb[0].mxu0 %v202
    %v237 = vpop.f32.mrb[0].mxu0
    %v238 = vadd.f32 0.0, %v237
    %v239 = vpop.f32.mrb[0].mxu0
    %v240 = vpop.f32.mrb[0].mxu0
    %v241 = vpop.f32.mrb[0].mxu0
    %242 = vdwg.mxu0
    %s243 = scalar_lea.vmem [#allocation2], 8
    %v244 = vld [vmem:[%s243] sm:$0xf]
    %v245 = vunpack.c.l.bf16 %v244
    %v246 = vadd.f32 %v245, %v238
    %v247 = vtanh.pop %v246
    %v248 = vpack.c.bf16 %v247, %v247
    %249 = vmatprep.subr.bf16.mxu0 0
    %250 = vmatpush1.bf16.msra.mxu0 %v96
    %251 = vmatprep.subr.bf16.mxu0 0
    %252 = vmatpush1.bf16.msra.mxu0 %v97
    %253 = vmatprep.subr.bf16.mxu0 0
    %254 = vmatpush1.bf16.msra.mxu0 %v98
    %255 = vmatprep.subr.bf16.mxu0 0
    %256 = vmatpush1.bf16.msra.mxu0 %v99
    %257 = vmatprep.subr.bf16.mxu0 0
    %258 = vmatpush1.bf16.msra.mxu0 %v100
    %259 = vmatprep.subr.bf16.mxu0 0
    %260 = vmatpush1.bf16.msra.mxu0 %v101
    %261 = vmatprep.subr.bf16.mxu0 0
    %262 = vmatpush1.bf16.msra.mxu0 %v102
    %263 = vmatprep.subr.bf16.mxu0 0
    %264 = vmatpush1.bf16.msra.mxu0 %v103
    %265 = vmatprep.subr.bf16.mxu0 0
    %266 = vmatpush1.bf16.msra.mxu0 0
    %267 = vmatprep.subr.bf16.mxu0 0
    %268 = vmatpush1.bf16.msra.mxu0 0
    %269 = vmatprep.subr.bf16.mxu0 0
    %270 = vmatpush1.bf16.msra.mxu0 0
    %271 = vmatprep.subr.bf16.mxu0 0
    %272 = vmatpush1.bf16.msra.mxu0 0
    %273 = vmatprep.subr.bf16.mxu0 0
    %274 = vmatpush1.bf16.msra.mxu0 0
    %275 = vmatprep.subr.bf16.mxu0 0
    %276 = vmatpush1.bf16.msra.mxu0 0
    %277 = vmatprep.subr.bf16.mxu0 0
    %278 = vmatpush1.bf16.msra.mxu0 0
    %279 = vmatprep.subr.bf16.mxu0 0
    %280 = vmatpush1.bf16.msra.mxu0 0
    %281 = vmatprep.mubr.bf16.mxu0 0
    %282 = vmatmul.mubr.bf16.gmra.mrb[0].mxu0 %v248
    %v283 = vpop.f32.mrb[0].mxu0
    %v284 = vadd.f32 0.0, %v283
    %v285 = vpop.f32.mrb[0].mxu0
    %v286 = vpop.f32.mrb[0].mxu0
    %v287 = vpop.f32.mrb[0].mxu0
    %288 = vdwg.mxu0
    %s289 = scalar_lea.vmem [#allocation2], 12
    %v290 = vld [vmem:[%s289] sm:$0xf]
    %v291 = vunpack.c.l.bf16 %v290
    %v292 = vadd.f32 %v291, %v284
    %v293 = vtanh.pop %v292
    %v294 = vpack.c.bf16 %v293, %v293
    %295 = vmatprep.subr.bf16.mxu0 0
    %296 = vmatpush1.bf16.msra.mxu0 %v96
    %297 = vmatprep.subr.bf16.mxu0 0
    %298 = vmatpush1.bf16.msra.mxu0 %v97
    %299 = vmatprep.subr.bf16.mxu0 0
    %300 = vmatpush1.bf16.msra.mxu0 %v98
    %301 = vmatprep.subr.bf16.mxu0 0
    %302 = vmatpush1.bf16.msra.mxu0 %v99
    %303 = vmatprep.subr.bf16.mxu0 0
    %304 = vmatpush1.bf16.msra.mxu0 %v100
    %305 = vmatprep.subr.bf16.mxu0 0
    %306 = vmatpush1.bf16.msra.mxu0 %v101
    %307 = vmatprep.subr.bf16.mxu0 0
    %308 = vmatpush1.bf16.msra.mxu0 %v102
    %309 = vmatprep.subr.bf16.mxu0 0
    %310 = vmatpush1.bf16.msra.mxu0 %v103
    %311 = vmatprep.subr.bf16.mxu0 0
    %312 = vmatpush1.bf16.msra.mxu0 0
    %313 = vmatprep.subr.bf16.mxu0 0
    %314 = vmatpush1.bf16.msra.mxu0 0
    %315 = vmatprep.subr.bf16.mxu0 0
    %316 = vmatpush1.bf16.msra.mxu0 0
    %317 = vmatprep.subr.bf16.mxu0 0
    %318 = vmatpush1.bf16.msra.mxu0 0
    %319 = vmatprep.subr.bf16.mxu0 0
    %320 = vmatpush1.bf16.msra.mxu0 0
    %321 = vmatprep.subr.bf16.mxu0 0
    %322 = vmatpush1.bf16.msra.mxu0 0
    %323 = vmatprep.subr.bf16.mxu0 0
    %324 = vmatpush1.bf16.msra.mxu0 0
    %325 = vmatprep.subr.bf16.mxu0 0
    %326 = vmatpush1.bf16.msra.mxu0 0
    %327 = vmatprep.mubr.bf16.mxu0 0
    %328 = vmatmul.mubr.bf16.gmra.mrb[0].mxu0 %v294
    %v329 = vpop.f32.mrb[0].mxu0
    %v330 = vadd.f32 0.0, %v329
    %v331 = vpop.f32.mrb[0].mxu0
    %v332 = vpop.f32.mrb[0].mxu0
    %v333 = vpop.f32.mrb[0].mxu0
    %334 = vdwg.mxu0
    %s335 = scalar_lea.vmem [#allocation2], 16
    %v336 = vld [vmem:[%s335] sm:$0xf]
    %v337 = vunpack.c.l.bf16 %v336
    %v338 = vadd.f32 %v337, %v330
    %v339 = vtanh.pop %v338
    %v340 = vpack.c.bf16 %v339, %v339
    %341 = vmatprep.subr.bf16.mxu0 0
    %342 = vmatpush1.bf16.msra.mxu0 %v96
    %343 = vmatprep.subr.bf16.mxu0 0
    %344 = vmatpush1.bf16.msra.mxu0 %v97
    %345 = vmatprep.subr.bf16.mxu0 0
    %346 = vmatpush1.bf16.msra.mxu0 %v98
    %347 = vmatprep.subr.bf16.mxu0 0
    %348 = vmatpush1.bf16.msra.mxu0 %v99
    %349 = vmatprep.subr.bf16.mxu0 0
    %350 = vmatpush1.bf16.msra.mxu0 %v100
    %351 = vmatprep.subr.bf16.mxu0 0
    %352 = vmatpush1.bf16.msra.mxu0 %v101
    %353 = vmatprep.subr.bf16.mxu0 0
    %354 = vmatpush1.bf16.msra.mxu0 %v102
    %355 = vmatprep.subr.bf16.mxu0 0
    %356 = vmatpush1.bf16.msra.mxu0 %v103
    %357 = vmatprep.subr.bf16.mxu0 0
    %358 = vmatpush1.bf16.msra.mxu0 0
    %359 = vmatprep.subr.bf16.mxu0 0
    %360 = vmatpush1.bf16.msra.mxu0 0
    %361 = vmatprep.subr.bf16.mxu0 0
    %362 = vmatpush1.bf16.msra.mxu0 0
    %363 = vmatprep.subr.bf16.mxu0 0
    %364 = vmatpush1.bf16.msra.mxu0 0
    %365 = vmatprep.subr.bf16.mxu0 0
    %366 = vmatpush1.bf16.msra.mxu0 0
    %367 = vmatprep.subr.bf16.mxu0 0
    %368 = vmatpush1.bf16.msra.mxu0 0
    %369 = vmatprep.subr.bf16.mxu0 0
    %370 = vmatpush1.bf16.msra.mxu0 0
    %371 = vmatprep.subr.bf16.mxu0 0
    %372 = vmatpush1.bf16.msra.mxu0 0
    %373 = vmatprep.mubr.bf16.mxu0 0
    %374 = vmatmul.mubr.bf16.gmra.mrb[0].mxu0 %v340
    %v375 = vpop.f32.mrb[0].mxu0
    %v376 = vadd.f32 0.0, %v375
    %v377 = vpop.f32.mrb[0].mxu0
    %v378 = vpop.f32.mrb[0].mxu0
    %v379 = vpop.f32.mrb[0].mxu0
    %380 = vdwg.mxu0
    %s381 = scalar_lea.vmem [#allocation2], 20
    %v382 = vld [vmem:[%s381] sm:$0xf]
    %v383 = vunpack.c.l.bf16 %v382
    %v384 = vadd.f32 %v383, %v376
    %v385 = vtanh.pop %v384
    %v386 = vpack.c.bf16 %v385, %v385
    %387 = vmatprep.subr.bf16.mxu0 0
    %388 = vmatpush1.bf16.msra.mxu0 %v96
    %389 = vmatprep.subr.bf16.mxu0 0
    %390 = vmatpush1.bf16.msra.mxu0 %v97
    %391 = vmatprep.subr.bf16.mxu0 0
    %392 = vmatpush1.bf16.msra.mxu0 %v98
    %393 = vmatprep.subr.bf16.mxu0 0
    %394 = vmatpush1.bf16.msra.mxu0 %v99
    %395 = vmatprep.subr.bf16.mxu0 0
    %396 = vmatpush1.bf16.msra.mxu0 %v100
    %397 = vmatprep.subr.bf16.mxu0 0
    %398 = vmatpush1.bf16.msra.mxu0 %v101
    %399 = vmatprep.subr.bf16.mxu0 0
    %400 = vmatpush1.bf16.msra.mxu0 %v102
    %401 = vmatprep.subr.bf16.mxu0 0
    %402 = vmatpush1.bf16.msra.mxu0 %v103
    %403 = vmatprep.subr.bf16.mxu0 0
    %404 = vmatpush1.bf16.msra.mxu0 0
    %405 = vmatprep.subr.bf16.mxu0 0
    %406 = vmatpush1.bf16.msra.mxu0 0
    %407 = vmatprep.subr.bf16.mxu0 0
    %408 = vmatpush1.bf16.msra.mxu0 0
    %409 = vmatprep.subr.bf16.mxu0 0
    %410 = vmatpush1.bf16.msra.mxu0 0
    %411 = vmatprep.subr.bf16.mxu0 0
    %412 = vmatpush1.bf16.msra.mxu0 0
    %413 = vmatprep.subr.bf16.mxu0 0
    %414 = vmatpush1.bf16.msra.mxu0 0
    %415 = vmatprep.subr.bf16.mxu0 0
    %416 = vmatpush1.bf16.msra.mxu0 0
    %417 = vmatprep.subr.bf16.mxu0 0
    %418 = vmatpush1.bf16.msra.mxu0 0
    %419 = vmatprep.mubr.bf16.mxu0 0
    %420 = vmatmul.mubr.bf16.gmra.mrb[0].mxu0 %v386
    %v421 = vpop.f32.mrb[0].mxu0
    %v422 = vadd.f32 0.0, %v421
    %v423 = vpop.f32.mrb[0].mxu0
    %v424 = vpop.f32.mrb[0].mxu0
    %v425 = vpop.f32.mrb[0].mxu0
    %426 = vdwg.mxu0
    %s427 = scalar_lea.vmem [#allocation2], 24
    %v428 = vld [vmem:[%s427] sm:$0xf]
    %v429 = vunpack.c.l.bf16 %v428
    %v430 = vadd.f32 %v429, %v422
    %v431 = vtanh.pop %v430
    %v432 = vpack.c.bf16 %v431, %v431
    %433 = vmatprep.subr.bf16.mxu0 0
    %434 = vmatpush1.bf16.msra.mxu0 %v96
    %435 = vmatprep.subr.bf16.mxu0 0
    %436 = vmatpush1.bf16.msra.mxu0 %v97
    %437 = vmatprep.subr.bf16.mxu0 0
    %438 = vmatpush1.bf16.msra.mxu0 %v98
    %439 = vmatprep.subr.bf16.mxu0 0
    %440 = vmatpush1.bf16.msra.mxu0 %v99
    %441 = vmatprep.subr.bf16.mxu0 0
    %442 = vmatpush1.bf16.msra.mxu0 %v100
    %443 = vmatprep.subr.bf16.mxu0 0
    %444 = vmatpush1.bf16.msra.mxu0 %v101
    %445 = vmatprep.subr.bf16.mxu0 0
    %446 = vmatpush1.bf16.msra.mxu0 %v102
    %447 = vmatprep.subr.bf16.mxu0 0
    %448 = vmatpush1.bf16.msra.mxu0 %v103
    %449 = vmatprep.subr.bf16.mxu0 0
    %450 = vmatpush1.bf16.msra.mxu0 0
    %451 = vmatprep.subr.bf16.mxu0 0
    %452 = vmatpush1.bf16.msra.mxu0 0
    %453 = vmatprep.subr.bf16.mxu0 0
    %454 = vmatpush1.bf16.msra.mxu0 0
    %455 = vmatprep.subr.bf16.mxu0 0
    %456 = vmatpush1.bf16.msra.mxu0 0
    %457 = vmatprep.subr.bf16.mxu0 0
    %458 = vmatpush1.bf16.msra.mxu0 0
    %459 = vmatprep.subr.bf16.mxu0 0
    %460 = vmatpush1.bf16.msra.mxu0 0
    %461 = vmatprep.subr.bf16.mxu0 0
    %462 = vmatpush1.bf16.msra.mxu0 0
    %463 = vmatprep.subr.bf16.mxu0 0
    %464 = vmatpush1.bf16.msra.mxu0 0
    %465 = vmatprep.mubr.bf16.mxu0 0
    %466 = vmatmul.mubr.bf16.gmra.mrb[0].mxu0 %v432
    %v467 = vpop.f32.mrb[0].mxu0
    %v468 = vadd.f32 0.0, %v467
    %v469 = vpop.f32.mrb[0].mxu0
    %v470 = vpop.f32.mrb[0].mxu0
    %v471 = vpop.f32.mrb[0].mxu0
    %472 = vdwg.mxu0
    %s473 = scalar_lea.vmem [#allocation2], 28
    %v474 = vld [vmem:[%s473] sm:$0xf]
    %v475 = vunpack.c.l.bf16 %v474
    %v476 = vadd.f32 %v475, %v468
    %v477 = vtanh.pop %v476
    %v478 = vpack.c.bf16 %v477, %v477
    %479 = vmatprep.subr.bf16.mxu0 0
    %480 = vmatpush1.bf16.msra.mxu0 %v96
    %481 = vmatprep.subr.bf16.mxu0 0
    %482 = vmatpush1.bf16.msra.mxu0 %v97
    %483 = vmatprep.subr.bf16.mxu0 0
    %484 = vmatpush1.bf16.msra.mxu0 %v98
    %485 = vmatprep.subr.bf16.mxu0 0
    %486 = vmatpush1.bf16.msra.mxu0 %v99
    %487 = vmatprep.subr.bf16.mxu0 0
    %488 = vmatpush1.bf16.msra.mxu0 %v100
    %489 = vmatprep.subr.bf16.mxu0 0
    %490 = vmatpush1.bf16.msra.mxu0 %v101
    %491 = vmatprep.subr.bf16.mxu0 0
    %492 = vmatpush1.bf16.msra.mxu0 %v102
    %493 = vmatprep.subr.bf16.mxu0 0
    %494 = vmatpush1.bf16.msra.mxu0 %v103
    %495 = vmatprep.subr.bf16.mxu0 0
    %496 = vmatpush1.bf16.msra.mxu0 0
    %497 = vmatprep.subr.bf16.mxu0 0
    %498 = vmatpush1.bf16.msra.mxu0 0
    %499 = vmatprep.subr.bf16.mxu0 0
    %500 = vmatpush1.bf16.msra.mxu0 0
    %501 = vmatprep.subr.bf16.mxu0 0
    %502 = vmatpush1.bf16.msra.mxu0 0
    %503 = vmatprep.subr.bf16.mxu0 0
    %504 = vmatpush1.bf16.msra.mxu0 0
    %505 = vmatprep.subr.bf16.mxu0 0
    %506 = vmatpush1.bf16.msra.mxu0 0
    %507 = vmatprep.subr.bf16.mxu0 0
    %508 = vmatpush1.bf16.msra.mxu0 0
    %509 = vmatprep.subr.bf16.mxu0 0
    %510 = vmatpush1.bf16.msra.mxu0 0
    %511 = vmatprep.mubr.bf16.mxu0 0
    %512 = vmatmul.mubr.bf16.gmra.mrb[0].mxu0 %v478
    %v513 = vpop.f32.mrb[0].mxu0
    %v514 = vadd.f32 0.0, %v513
    %v515 = vpop.f32.mrb[0].mxu0
    %v516 = vpop.f32.mrb[0].mxu0
    %v517 = vpop.f32.mrb[0].mxu0
    %518 = vdwg.mxu0
    %s519 = scalar_lea.vmem [#allocation2], 32
    %v520 = vld [vmem:[%s519] sm:$0xf]
    %v521 = vunpack.c.l.bf16 %v520
    %v522 = vadd.f32 %v521, %v514
    %v523 = vtanh.pop %v522
    %v524 = vpack.c.bf16 %v523, %v523
    %525 = vmatprep.subr.bf16.mxu0 0
    %526 = vmatpush1.bf16.msra.mxu0 %v96
    %527 = vmatprep.subr.bf16.mxu0 0
    %528 = vmatpush1.bf16.msra.mxu0 %v97
    %529 = vmatprep.subr.bf16.mxu0 0
    %530 = vmatpush1.bf16.msra.mxu0 %v98
    %531 = vmatprep.subr.bf16.mxu0 0
    %532 = vmatpush1.bf16.msra.mxu0 %v99
    %533 = vmatprep.subr.bf16.mxu0 0
    %534 = vmatpush1.bf16.msra.mxu0 %v100
    %535 = vmatprep.subr.bf16.mxu0 0
    %536 = vmatpush1.bf16.msra.mxu0 %v101
    %537 = vmatprep.subr.bf16.mxu0 0
    %538 = vmatpush1.bf16.msra.mxu0 %v102
    %539 = vmatprep.subr.bf16.mxu0 0
    %540 = vmatpush1.bf16.msra.mxu0 %v103
    %541 = vmatprep.subr.bf16.mxu0 0
    %542 = vmatpush1.bf16.msra.mxu0 0
    %543 = vmatprep.subr.bf16.mxu0 0
    %544 = vmatpush1.bf16.msra.mxu0 0
    %545 = vmatprep.subr.bf16.mxu0 0
    %546 = vmatpush1.bf16.msra.mxu0 0
    %547 = vmatprep.subr.bf16.mxu0 0
    %548 = vmatpush1.bf16.msra.mxu0 0
    %549 = vmatprep.subr.bf16.mxu0 0
    %550 = vmatpush1.bf16.msra.mxu0 0
    %551 = vmatprep.subr.bf16.mxu0 0
    %552 = vmatpush1.bf16.msra.mxu0 0
    %553 = vmatprep.subr.bf16.mxu0 0
    %554 = vmatpush1.bf16.msra.mxu0 0
    %555 = vmatprep.subr.bf16.mxu0 0
    %556 = vmatpush1.bf16.msra.mxu0 0
    %557 = vmatprep.mubr.bf16.mxu0 0
    %558 = vmatmul.mubr.bf16.gmra.mrb[0].mxu0 %v524
    %v559 = vpop.f32.mrb[0].mxu0
    %v560 = vadd.f32 0.0, %v559
    %v561 = vpop.f32.mrb[0].mxu0
    %v562 = vpop.f32.mrb[0].mxu0
    %v563 = vpop.f32.mrb[0].mxu0
    %564 = vdwg.mxu0
    %s565 = scalar_lea.vmem [#allocation2], 36
    %v566 = vld [vmem:[%s565] sm:$0xf]
    %v567 = vunpack.c.l.bf16 %v566
    %v568 = vadd.f32 %v567, %v560
    %v569 = vtanh.pop %v568
    %v570 = vpack.c.bf16 %v569, %v569
    %571 = vmatprep.subr.bf16.mxu0 0
    %572 = vmatpush1.bf16.msra.mxu0 %v96
    %573 = vmatprep.subr.bf16.mxu0 0
    %574 = vmatpush1.bf16.msra.mxu0 %v97
    %575 = vmatprep.subr.bf16.mxu0 0
    %576 = vmatpush1.bf16.msra.mxu0 %v98
    %577 = vmatprep.subr.bf16.mxu0 0
    %578 = vmatpush1.bf16.msra.mxu0 %v99
    %579 = vmatprep.subr.bf16.mxu0 0
    %580 = vmatpush1.bf16.msra.mxu0 %v100
    %581 = vmatprep.subr.bf16.mxu0 0
    %582 = vmatpush1.bf16.msra.mxu0 %v101
    %583 = vmatprep.subr.bf16.mxu0 0
    %584 = vmatpush1.bf16.msra.mxu0 %v102
    %585 = vmatprep.subr.bf16.mxu0 0
    %586 = vmatpush1.bf16.msra.mxu0 %v103
    %587 = vmatprep.subr.bf16.mxu0 0
    %588 = vmatpush1.bf16.msra.mxu0 0
    %589 = vmatprep.subr.bf16.mxu0 0
    %590 = vmatpush1.bf16.msra.mxu0 0
    %591 = vmatprep.subr.bf16.mxu0 0
    %592 = vmatpush1.bf16.msra.mxu0 0
    %593 = vmatprep.subr.bf16.mxu0 0
    %594 = vmatpush1.bf16.msra.mxu0 0
    %595 = vmatprep.subr.bf16.mxu0 0
    %596 = vmatpush1.bf16.msra.mxu0 0
    %597 = vmatprep.subr.bf16.mxu0 0
    %598 = vmatpush1.bf16.msra.mxu0 0
    %599 = vmatprep.subr.bf16.mxu0 0
    %600 = vmatpush1.bf16.msra.mxu0 0
    %601 = vmatprep.subr.bf16.mxu0 0
    %602 = vmatpush1.bf16.msra.mxu0 0
    %603 = vmatprep.mubr.bf16.mxu0 0
    %604 = vmatmul.mubr.bf16.gmra.mrb[0].mxu0 %v570
    %v605 = vpop.f32.mrb[0].mxu0
    %v606 = vadd.f32 0.0, %v605
    %v607 = vpop.f32.mrb[0].mxu0
    %v608 = vpop.f32.mrb[0].mxu0
    %v609 = vpop.f32.mrb[0].mxu0
    %610 = vdwg.mxu0
    %s611 = scalar_lea.vmem [#allocation2], 40
    %v612 = vld [vmem:[%s611] sm:$0xf]
    %v613 = vunpack.c.l.bf16 %v612
    %v614 = vadd.f32 %v613, %v606
    %v615 = vtanh.pop %v614
    %v616 = vpack.c.bf16 %v615, %v615
    %617 = vmatprep.subr.bf16.mxu0 0
    %618 = vmatpush1.bf16.msra.mxu0 %v96
    %619 = vmatprep.subr.bf16.mxu0 0
    %620 = vmatpush1.bf16.msra.mxu0 %v97
    %621 = vmatprep.subr.bf16.mxu0 0
    %622 = vmatpush1.bf16.msra.mxu0 %v98
    %623 = vmatprep.subr.bf16.mxu0 0
    %624 = vmatpush1.bf16.msra.mxu0 %v99
    %625 = vmatprep.subr.bf16.mxu0 0
    %626 = vmatpush1.bf16.msra.mxu0 %v100
    %627 = vmatprep.subr.bf16.mxu0 0
    %628 = vmatpush1.bf16.msra.mxu0 %v101
    %629 = vmatprep.subr.bf16.mxu0 0
    %630 = vmatpush1.bf16.msra.mxu0 %v102
    %631 = vmatprep.subr.bf16.mxu0 0
    %632 = vmatpush1.bf16.msra.mxu0 %v103
    %633 = vmatprep.subr.bf16.mxu0 0
    %634 = vmatpush1.bf16.msra.mxu0 0
    %635 = vmatprep.subr.bf16.mxu0 0
    %636 = vmatpush1.bf16.msra.mxu0 0
    %637 = vmatprep.subr.bf16.mxu0 0
    %638 = vmatpush1.bf16.msra.mxu0 0
    %639 = vmatprep.subr.bf16.mxu0 0
    %640 = vmatpush1.bf16.msra.mxu0 0
    %641 = vmatprep.subr.bf16.mxu0 0
    %642 = vmatpush1.bf16.msra.mxu0 0
    %643 = vmatprep.subr.bf16.mxu0 0
    %644 = vmatpush1.bf16.msra.mxu0 0
    %645 = vmatprep.subr.bf16.mxu0 0
    %646 = vmatpush1.bf16.msra.mxu0 0
    %647 = vmatprep.subr.bf16.mxu0 0
    %648 = vmatpush1.bf16.msra.mxu0 0
    %649 = vmatprep.mubr.bf16.mxu0 0
    %650 = vmatmul.mubr.bf16.gmra.mrb[0].mxu0 %v616
    %v651 = vpop.f32.mrb[0].mxu0
    %v652 = vadd.f32 0.0, %v651
    %v653 = vpop.f32.mrb[0].mxu0
    %v654 = vpop.f32.mrb[0].mxu0
    %v655 = vpop.f32.mrb[0].mxu0
    %656 = vdwg.mxu0
    %s657 = scalar_lea.vmem [#allocation2], 44
    %v658 = vld [vmem:[%s657] sm:$0xf]
    %v659 = vunpack.c.l.bf16 %v658
    %v660 = vadd.f32 %v659, %v652
    %v661 = vtanh.pop %v660
    %v662 = vpack.c.bf16 %v661, %v661
    %663 = vmatprep.subr.bf16.mxu0 0
    %664 = vmatpush1.bf16.msra.mxu0 %v96
    %665 = vmatprep.subr.bf16.mxu0 0
    %666 = vmatpush1.bf16.msra.mxu0 %v97
    %667 = vmatprep.subr.bf16.mxu0 0
    %668 = vmatpush1.bf16.msra.mxu0 %v98
    %669 = vmatprep.subr.bf16.mxu0 0
    %670 = vmatpush1.bf16.msra.mxu0 %v99
    %671 = vmatprep.subr.bf16.mxu0 0
    %672 = vmatpush1.bf16.msra.mxu0 %v100
    %673 = vmatprep.subr.bf16.mxu0 0
    %674 = vmatpush1.bf16.msra.mxu0 %v101
    %675 = vmatprep.subr.bf16.mxu0 0
    %676 = vmatpush1.bf16.msra.mxu0 %v102
    %677 = vmatprep.subr.bf16.mxu0 0
    %678 = vmatpush1.bf16.msra.mxu0 %v103
    %679 = vmatprep.subr.bf16.mxu0 0
    %680 = vmatpush1.bf16.msra.mxu0 0
    %681 = vmatprep.subr.bf16.mxu0 0
    %682 = vmatpush1.bf16.msra.mxu0 0
    %683 = vmatprep.subr.bf16.mxu0 0
    %684 = vmatpush1.bf16.msra.mxu0 0
    %685 = vmatprep.subr.bf16.mxu0 0
    %686 = vmatpush1.bf16.msra.mxu0 0
    %687 = vmatprep.subr.bf16.mxu0 0
    %688 = vmatpush1.bf16.msra.mxu0 0
    %689 = vmatprep.subr.bf16.mxu0 0
    %690 = vmatpush1.bf16.msra.mxu0 0
    %691 = vmatprep.subr.bf16.mxu0 0
    %692 = vmatpush1.bf16.msra.mxu0 0
    %693 = vmatprep.subr.bf16.mxu0 0
    %694 = vmatpush1.bf16.msra.mxu0 0
    %695 = vmatprep.mubr.bf16.mxu0 0
    %696 = vmatmul.mubr.bf16.gmra.mrb[0].mxu0 %v662
    %v697 = vpop.f32.mrb[0].mxu0
    %v698 = vadd.f32 0.0, %v697
    %v699 = vpop.f32.mrb[0].mxu0
    %v700 = vpop.f32.mrb[0].mxu0
    %v701 = vpop.f32.mrb[0].mxu0
    %702 = vdwg.mxu0
    %s703 = scalar_lea.vmem [#allocation2], 48
    %v704 = vld [vmem:[%s703] sm:$0xf]
    %v705 = vunpack.c.l.bf16 %v704
    %v706 = vadd.f32 %v705, %v698
    %v707 = vtanh.pop %v706
    %v708 = vpack.c.bf16 %v707, %v707
    %709 = vmatprep.subr.bf16.mxu0 0
    %710 = vmatpush1.bf16.msra.mxu0 %v96
    %711 = vmatprep.subr.bf16.mxu0 0
    %712 = vmatpush1.bf16.msra.mxu0 %v97
    %713 = vmatprep.subr.bf16.mxu0 0
    %714 = vmatpush1.bf16.msra.mxu0 %v98
    %715 = vmatprep.subr.bf16.mxu0 0
    %716 = vmatpush1.bf16.msra.mxu0 %v99
    %717 = vmatprep.subr.bf16.mxu0 0
    %718 = vmatpush1.bf16.msra.mxu0 %v100
    %719 = vmatprep.subr.bf16.mxu0 0
    %720 = vmatpush1.bf16.msra.mxu0 %v101
    %721 = vmatprep.subr.bf16.mxu0 0
    %722 = vmatpush1.bf16.msra.mxu0 %v102
    %723 = vmatprep.subr.bf16.mxu0 0
    %724 = vmatpush1.bf16.msra.mxu0 %v103
    %725 = vmatprep.subr.bf16.mxu0 0
    %726 = vmatpush1.bf16.msra.mxu0 0
    %727 = vmatprep.subr.bf16.mxu0 0
    %728 = vmatpush1.bf16.msra.mxu0 0
    %729 = vmatprep.subr.bf16.mxu0 0
    %730 = vmatpush1.bf16.msra.mxu0 0
    %731 = vmatprep.subr.bf16.mxu0 0
    %732 = vmatpush1.bf16.msra.mxu0 0
    %733 = vmatprep.subr.bf16.mxu0 0
    %734 = vmatpush1.bf16.msra.mxu0 0
    %735 = vmatprep.subr.bf16.mxu0 0
    %736 = vmatpush1.bf16.msra.mxu0 0
    %737 = vmatprep.subr.bf16.mxu0 0
    %738 = vmatpush1.bf16.msra.mxu0 0
    %739 = vmatprep.subr.bf16.mxu0 0
    %740 = vmatpush1.bf16.msra.mxu0 0
    %741 = vmatprep.mubr.bf16.mxu0 0
    %742 = vmatmul.mubr.bf16.gmra.mrb[0].mxu0 %v708
    %v743 = vpop.f32.mrb[0].mxu0
    %v744 = vadd.f32 0.0, %v743
    %v745 = vpop.f32.mrb[0].mxu0
    %v746 = vpop.f32.mrb[0].mxu0
    %v747 = vpop.f32.mrb[0].mxu0
    %748 = vdwg.mxu0
    %s749 = scalar_lea.vmem [#allocation2], 52
    %v750 = vld [vmem:[%s749] sm:$0xf]
    %v751 = vunpack.c.l.bf16 %v750
    %v752 = vadd.f32 %v751, %v744
    %v753 = vtanh.pop %v752
    %v754 = vpack.c.bf16 %v753, %v753
    %755 = vmatprep.subr.bf16.mxu0 0
    %756 = vmatpush1.bf16.msra.mxu0 %v96
    %757 = vmatprep.subr.bf16.mxu0 0
    %758 = vmatpush1.bf16.msra.mxu0 %v97
    %759 = vmatprep.subr.bf16.mxu0 0
    %760 = vmatpush1.bf16.msra.mxu0 %v98
    %761 = vmatprep.subr.bf16.mxu0 0
    %762 = vmatpush1.bf16.msra.mxu0 %v99
    %763 = vmatprep.subr.bf16.mxu0 0
    %764 = vmatpush1.bf16.msra.mxu0 %v100
    %765 = vmatprep.subr.bf16.mxu0 0
    %766 = vmatpush1.bf16.msra.mxu0 %v101
    %767 = vmatprep.subr.bf16.mxu0 0
    %768 = vmatpush1.bf16.msra.mxu0 %v102
    %769 = vmatprep.subr.bf16.mxu0 0
    %770 = vmatpush1.bf16.msra.mxu0 %v103
    %771 = vmatprep.subr.bf16.mxu0 0
    %772 = vmatpush1.bf16.msra.mxu0 0
    %773 = vmatprep.subr.bf16.mxu0 0
    %774 = vmatpush1.bf16.msra.mxu0 0
    %775 = vmatprep.subr.bf16.mxu0 0
    %776 = vmatpush1.bf16.msra.mxu0 0
    %777 = vmatprep.subr.bf16.mxu0 0
    %778 = vmatpush1.bf16.msra.mxu0 0
    %779 = vmatprep.subr.bf16.mxu0 0
    %780 = vmatpush1.bf16.msra.mxu0 0
    %781 = vmatprep.subr.bf16.mxu0 0
    %782 = vmatpush1.bf16.msra.mxu0 0
    %783 = vmatprep.subr.bf16.mxu0 0
    %784 = vmatpush1.bf16.msra.mxu0 0
    %785 = vmatprep.subr.bf16.mxu0 0
    %786 = vmatpush1.bf16.msra.mxu0 0
    %787 = vmatprep.mubr.bf16.mxu0 0
    %788 = vmatmul.mubr.bf16.gmra.mrb[0].mxu0 %v754
    %v789 = vpop.f32.mrb[0].mxu0
    %v790 = vadd.f32 0.0, %v789
    %v791 = vpop.f32.mrb[0].mxu0
    %v792 = vpop.f32.mrb[0].mxu0
    %v793 = vpop.f32.mrb[0].mxu0
    %794 = vdwg.mxu0
    %s795 = scalar_lea.vmem [#allocation2], 56
    %v796 = vld [vmem:[%s795] sm:$0xf]
    %v797 = vunpack.c.l.bf16 %v796
    %v798 = vadd.f32 %v797, %v790
    %v799 = vtanh.pop %v798
    %v800 = vpack.c.bf16 %v799, %v799
    %801 = vmatprep.subr.bf16.mxu0 0
    %802 = vmatpush1.bf16.msra.mxu0 %v96
    %803 = vmatprep.subr.bf16.mxu0 0
    %804 = vmatpush1.bf16.msra.mxu0 %v97
    %805 = vmatprep.subr.bf16.mxu0 0
    %806 = vmatpush1.bf16.msra.mxu0 %v98
    %807 = vmatprep.subr.bf16.mxu0 0
    %808 = vmatpush1.bf16.msra.mxu0 %v99
    %809 = vmatprep.subr.bf16.mxu0 0
    %810 = vmatpush1.bf16.msra.mxu0 %v100
    %811 = vmatprep.subr.bf16.mxu0 0
    %812 = vmatpush1.bf16.msra.mxu0 %v101
    %813 = vmatprep.subr.bf16.mxu0 0
    %814 = vmatpush1.bf16.msra.mxu0 %v102
    %815 = vmatprep.subr.bf16.mxu0 0
    %816 = vmatpush1.bf16.msra.mxu0 %v103
    %817 = vmatprep.subr.bf16.mxu0 0
    %818 = vmatpush1.bf16.msra.mxu0 0
    %819 = vmatprep.subr.bf16.mxu0 0
    %820 = vmatpush1.bf16.msra.mxu0 0
    %821 = vmatprep.subr.bf16.mxu0 0
    %822 = vmatpush1.bf16.msra.mxu0 0
    %823 = vmatprep.subr.bf16.mxu0 0
    %824 = vmatpush1.bf16.msra.mxu0 0
    %825 = vmatprep.subr.bf16.mxu0 0
    %826 = vmatpush1.bf16.msra.mxu0 0
    %827 = vmatprep.subr.bf16.mxu0 0
    %828 = vmatpush1.bf16.msra.mxu0 0
    %829 = vmatprep.subr.bf16.mxu0 0
    %830 = vmatpush1.bf16.msra.mxu0 0
    %831 = vmatprep.subr.bf16.mxu0 0
    %832 = vmatpush1.bf16.msra.mxu0 0
    %833 = vmatprep.mubr.bf16.mxu0 0
    %834 = vmatmul.mubr.bf16.gmra.mrb[0].mxu0 %v800
    %v835 = vpop.f32.mrb[0].mxu0
    %v836 = vadd.f32 0.0, %v835
    %v837 = vpop.f32.mrb[0].mxu0
    %v838 = vpop.f32.mrb[0].mxu0
    %v839 = vpop.f32.mrb[0].mxu0
    %840 = vdwg.mxu0
    %s841 = scalar_lea.vmem [#allocation2], 60
    %v842 = vld [vmem:[%s841] sm:$0xf]
    %v843 = vunpack.c.l.bf16 %v842
    %v844 = vadd.f32 %v843, %v836
    %v845 = vtanh.pop %v844
    %846 = vst [vmem:[#allocation7] sm:$0xff] %v845
    // Predicated region
    $region22: #{tpu_custom_call.1} parent=1 // pred_check
      _
    $region23: #{tpu_custom_call.1} parent=1 // pred_check_branch
      %848 = sbr.rel (0) target = $region25
    $region24: #{tpu_custom_call.1} parent=1 // pred_region
      %s850 = ssub.s32 128, 128
      %851 = vsyncadd [#allocation4], %s850
      %s853 = sshll.u32 [#allocation7], 4
      %s854 = int_to_ptr.vmem [resolvable:$true] %s853
      %856 = dma.vmem_to_hbm [thread:$0]  %s854, 128, %s2, [#allocation4]
    $region25: #{tpu_custom_call.1} parent=1 // pred_fallthru
      _
    // Predicated region
    $region26: #{tpu_custom_call.1} parent=1 // pred_check
      _
    $region27: #{tpu_custom_call.1} parent=1 // pred_check_branch
      %858 = sbr.rel (0) target = $region29
    $region28: #{tpu_custom_call.1} parent=1 // pred_region
      %859 = dma.done [#allocation4], 128
    $region29: #{tpu_custom_call.1} parent=1 // pred_fallthru
      _
    %860 = vsyncpa [#allocation3], 1
    %861 = vsyncpa [#allocation6], 1
    %862 = vsyncpa [#allocation4], 1

</llo_original>
